<compile_context>
chip_gen: v7x
topology: tpu7x:2x2x1
jax: 0.10.0
libtpu: 0.0.40
codegen_flags: <defaults>
</compile_context>

<pallas_src>
import jax
import jax.numpy as jnp
from jax.experimental import pallas as pl
from jax.experimental.pallas import tpu as pltpu

_LANE = 128
# sublane packing multiple per itemsize (f32: 8, bf16/f16: 16, int8/fp8: 32)
_SUBLANE = {4: 8, 2: 16, 1: 32}


def _round_up(a, b):
    return ((a + b - 1) // b) * b


def _swish_kernel(x_ref, o_ref):
    x = x_ref[...]
    # bf16 is VPU/EUP-native on v6e/v7x; everything else computes in f32.
    cdt = jnp.bfloat16 if x.dtype == jnp.bfloat16 else jnp.float32
    xc = x.astype(cdt)
    # sigmoid(x) = 0.5*(tanh(x/2)+1): one EUP op + a VALU mul/add, instead of
    # exp + full-precision divide. Keeps the kernel HBM-bound on all chips.
    s = 0.5 * (jnp.tanh(0.5 * xc) + 1.0)
    o_ref[...] = (xc * s).astype(o_ref.dtype)


def _tile_params():
    """Per-generation (target_tile_bytes, vmem_limit_bytes)."""
    try:
        kind = jax.devices()[0].device_kind.lower()
    except Exception:
        kind = ""
    if "v7" in kind:
        # 2 buffers x (in + out) x 8 MiB = 32 MiB, under the 48 MiB limit and
        # well under v7x's 64 MiB per-TC VMEM; halves the ~0.35 us/step
        # overhead's share of a ~2.5 us step at 3.2 TB/s.
        return 8 * 1024 * 1024, 48 * 1024 * 1024
    # v5e/v6e: 2 buffers x (in + out) x 4 MiB = 16 MiB; the explicit 32 MiB
    # limit is what keeps this viable on v5e (16 MiB scoped default).
    return 4 * 1024 * 1024, 32 * 1024 * 1024


def _choose_tile_rows(rows, row_bytes, sublane, target_tile_bytes):
    """Sublane-aligned row tile; each block ~target_tile_bytes."""
    tile_rows = max(sublane, (target_tile_bytes // row_bytes) // sublane * sublane)
    if tile_rows < rows:
        return tile_rows
    # Whole slab fits in one target-size tile: still split into >=4 (or 2)
    # grid steps for pipeline overlap and v7x 2-TC sharding, as long as each
    # tile stays >= ~512 KiB so the ~0.35 us/step overhead stays negligible.
    min_rows = max(sublane, _round_up(pl.cdiv(512 * 1024, row_bytes), sublane))
    for steps in (8, 4, 2):
        cand = _round_up(pl.cdiv(rows, steps), sublane)
        if cand >= min_rows and pl.cdiv(rows, cand) >= 2:
            return cand
    return rows  # small slab: single grid step


def swish(x, *, donate_input=False):
    """Elementwise x * sigmoid(x) (Swish / SiLU). Any shape/dtype.

    donate_input=True adds input_output_aliases={0: 0} (in-place-style buffer
    reuse, matching the PyTorch module's inplace flag) — only use when the
    caller does not need `x` afterwards.
    """
    orig_shape = x.shape
    dtype = x.dtype
    n = x.size
    if n == 0:
        return x

    if n % _LANE != 0:
        # Ragged element count (rare for conv feature maps): a fused XLA
        # elementwise op is already at the HBM roofline (1 read + 1 write) —
        # unlike the old pad + slice round trip (~3x traffic).
        # TODO(synk): handle this in-kernel with a masked pltpu.store driven
        # by a scalar-prefetched element count if this path ever gets hot.
        cdt = jnp.bfloat16 if dtype == jnp.bfloat16 else jnp.float32
        xc = x.astype(cdt)
        return (xc * (0.5 * (jnp.tanh(0.5 * xc) + 1.0))).astype(dtype)

    itemsize = jnp.dtype(dtype).itemsize
    sublane = _SUBLANE.get(itemsize, 8)
    target_tile_bytes, vmem_limit = _tile_params()

    # Zero-copy fast path: reshape to a lane-dense 2-D slab (last dim as wide
    # as evenly possible, up to 32*128 lanes) so stores are wide unmasked vst.
    total_rows = n // _LANE
    for w in (32, 16, 8, 4, 2, 1):
        if total_rows % w == 0:
            break
    C = w * _LANE
    rows = total_rows // w
    slab = x.reshape(rows, C)

    tile_rows = _choose_tile_rows(rows, C * itemsize, sublane, target_tile_bytes)
    grid_n = pl.cdiv(rows, tile_rows)

    # v7x megacore: a small odd step count leaves one TensorCore an extra step
    # (up to 33% tail imbalance) — shrink the tile so the grid becomes even.
    if 2 < grid_n < 16 and grid_n % 2 == 1:
        cand = max(sublane, _round_up(pl.cdiv(rows, grid_n + 1), sublane))
        if pl.cdiv(rows, cand) % 2 == 0:
            tile_rows = cand
            grid_n = pl.cdiv(rows, cand)

    out = pl.pallas_call(
        _swish_kernel,
        out_shape=jax.ShapeDtypeStruct((rows, C), dtype),
        grid_spec=pl.GridSpec(
            grid=(grid_n,),
            in_specs=[pl.BlockSpec((tile_rows, C), lambda i: (i, 0))],
            out_specs=pl.BlockSpec((tile_rows, C), lambda i: (i, 0)),
        ),
        compiler_params=pltpu.CompilerParams(
            dimension_semantics=("parallel",),
            vmem_limit_bytes=vmem_limit,
        ),
        input_output_aliases=({0: 0} if donate_input else {}),
    )(slab)

    return out.reshape(orig_shape)


if __name__ == "__main__":
    key = jax.random.PRNGKey(0)

    # NCHW input, consistent with the module's typical conv-feature usage.
    x = jax.random.normal(key, (2, 4, 16, 16), dtype=jnp.float32)
    y = swish(x)
    jax.block_until_ready(y)

    y_ref = x * jax.nn.sigmoid(x)
    assert y.shape == x.shape and y.dtype == x.dtype
    assert jnp.max(jnp.abs(y - y_ref)) < 1e-5

    # Quick check of the ragged (non-128-multiple) fallback path.
    x2 = jax.random.normal(jax.random.PRNGKey(1), (3, 5, 7), dtype=jnp.float32)
    y2 = swish(x2)
    jax.block_until_ready(y2)
    assert jnp.max(jnp.abs(y2 - x2 * jax.nn.sigmoid(x2))) < 1e-5

    print("KERNEL_OK")
</pallas_src>

<mosaic_0001>
module attributes {stable_mosaic.version = 11 : i64} {
  func.func @_swish_kernel(%arg0: i32, %arg1: memref<1x2048xf32, #tpu.memory_space<vmem>>, %arg2: memref<1x2048xf32, #tpu.memory_space<vmem>>) attributes {dimension_semantics = [#tpu.dimension_semantics<parallel>], iteration_bounds = array<i64: 1>, scalar_prefetch = 0 : i64, scratch_operands = 0 : i64, tpu.core_type = #tpu.core_type<tc>, window_params = [{transform_indices = @transform_0, window_bounds = array<i64: 1, 2048>}, {transform_indices = @transform_1, window_bounds = array<i64: 1, 2048>}]} {
    %c0 = arith.constant 0 : index
    %c0_0 = arith.constant 0 : index
    %0 = vector.load %arg1[%c0, %c0_0] : memref<1x2048xf32, #tpu.memory_space<vmem>>, vector<1x2048xf32>
    %cst = arith.constant 5.000000e-01 : f32
    %1 = vector.broadcast %cst : f32 to vector<1x2048xf32>
    %2 = arith.mulf %1, %0 : vector<1x2048xf32>
    %3 = math.tanh %2 : vector<1x2048xf32>
    %cst_1 = arith.constant 1.000000e+00 : f32
    %4 = vector.broadcast %cst_1 : f32 to vector<1x2048xf32>
    %5 = arith.addf %3, %4 : vector<1x2048xf32>
    %cst_2 = arith.constant 5.000000e-01 : f32
    %6 = vector.broadcast %cst_2 : f32 to vector<1x2048xf32>
    %7 = arith.mulf %6, %5 : vector<1x2048xf32>
    %8 = arith.mulf %0, %7 : vector<1x2048xf32>
    %c0_3 = arith.constant 0 : index
    %c0_4 = arith.constant 0 : index
    %9 = vector.load %arg2[%c0_3, %c0_4] : memref<1x2048xf32, #tpu.memory_space<vmem>>, vector<1x2048xf32>
    tpu.vector_store %arg2[%c0_3, %c0_4], %8 {strides = array<i32>} : memref<1x2048xf32, #tpu.memory_space<vmem>>, vector<1x2048xf32>,
    return
  }
  func.func @transform_0(%arg0: i32) -> (i32, i32) {
    %c0_i32 = arith.constant 0 : i32
    %c0_i32_0 = arith.constant 0 : i32
    return %arg0, %c0_i32 : i32, i32
  }
  func.func @transform_1(%arg0: i32) -> (i32, i32) {
    %c0_i32 = arith.constant 0 : i32
    %c0_i32_0 = arith.constant 0 : i32
    return %arg0, %c0_i32 : i32, i32
  }
}

</mosaic_0001>

<llo_original>
// kernel: tpu_custom_call.1
$region0: #{tpu_custom_call.1}
  #allocation0 [shape = 'u32[]', space=smem, size = 0x4, offset = 0x4, fixed_abs, tag = 'smem constant byte address 0x4 - core index']
  #allocation1 [shape = 'u32[144,128]{1,0:T(1,128)}', space=vmem, size = 0x12000, scoped, tag = 'internal scratch']
  %s0 = inlined_call_operand.hbm [shape: f32[1,2048], index: 0, kind: input, shape index: {}]
  %s1 = inlined_call_operand.hbm [shape: f32[1,2048], index: 1, kind: output, shape index: {}]
  %s2 = sld [smem:[#allocation0]]
  $region18: #{tpu_custom_call.1} parent=0
    _
  %s4 = ssub.s32 1, %s2
  %s5 = scalar_select 0, %s4, %s2
  $region1: #{tpu_custom_call.1} parent=0
    #allocation2 [shape = 'u8[8192]{0}', space=vmem, size = 0x2000, scoped, tag = 'input window, operand 0, single buffered']
    #allocation3 [shape = 's32[1]{0}', space=sflag, size = 0x4, scoped, tag = 'scoped memory for tpu_custom_call.1']
    #allocation4 [shape = 's32[1]{0}', space=sflag, size = 0x4, scoped, tag = 'scoped memory for tpu_custom_call.1']
    #allocation5 [shape = 'u8[8192]{0}', space=vmem, size = 0x2000, scoped, tag = 'output window, operand 0, single buffered']
    %6 = vsyncpa [#allocation3], 0
    %7 = vsyncpa [#allocation4], 0
    // Predicated region
    $region2: #{tpu_custom_call.1} parent=1 // pred_check
      _
    $region3: #{tpu_custom_call.1} parent=1 // pred_check_branch
      %9 = sbr.rel (0) target = $region5
    $region4: #{tpu_custom_call.1} parent=1 // pred_region
      %s11 = ssub.s32 256, 256
      %12 = vsyncadd [#allocation3], %s11
      %s14 = sshll.u32 [#allocation2], 4
      %s15 = int_to_ptr.vmem [resolvable:$true] %s14
      %17 = dma.hbm_to_vmem [thread:$0]  %s0, 256, %s15, [#allocation3]
    $region5: #{tpu_custom_call.1} parent=1 // pred_fallthru
      _
    // Predicated region
    $region6: #{tpu_custom_call.1} parent=1 // pred_check
      _
    $region7: #{tpu_custom_call.1} parent=1 // pred_check_branch
      %19 = sbr.rel (0) target = $region9
    $region8: #{tpu_custom_call.1} parent=1 // pred_region
      %20 = dma.done [#allocation3], 256
    $region9: #{tpu_custom_call.1} parent=1 // pred_fallthru
      _
    %v21 = vld [vmem:[#allocation2] sm:$0xff]
    %v22 = vld [vmem:[#allocation2 + $0x8] sm:$0xff]
    %v23 = vmul.f32 %v21, 0.5
    %v24 = vmul.f32 %v22, 0.5
    %v25 = vtanh.pop %v23
    %v26 = vtanh.pop %v24
    %v27 = vadd.f32 %v25, 1.0
    %v28 = vadd.f32 %v26, 1.0
    %v29 = vmul.f32 %v27, 0.5
    %v30 = vmul.f32 %v28, 0.5
    %v31 = vmul.f32 %v21, %v29
    %v32 = vmul.f32 %v22, %v30
    %33 = vst [vmem:[#allocation5] sm:$0xff] %v31
    %34 = vst [vmem:[#allocation5 + $0x8] sm:$0xff] %v32
    // Predicated region
    $region10: #{tpu_custom_call.1} parent=1 // pred_check
      _
    $region11: #{tpu_custom_call.1} parent=1 // pred_check_branch
      %36 = sbr.rel (0) target = $region13
    $region12: #{tpu_custom_call.1} parent=1 // pred_region
      %s38 = ssub.s32 256, 256
      %39 = vsyncadd [#allocation4], %s38
      %s41 = sshll.u32 [#allocation5], 4
      %s42 = int_to_ptr.vmem [resolvable:$true] %s41
      %44 = dma.vmem_to_hbm [thread:$0]  %s42, 256, %s1, [#allocation4]
    $region13: #{tpu_custom_call.1} parent=1 // pred_fallthru
      _
    // Predicated region
    $region14: #{tpu_custom_call.1} parent=1 // pred_check
      _
    $region15: #{tpu_custom_call.1} parent=1 // pred_check_branch
      %46 = sbr.rel (0) target = $region17
    $region16: #{tpu_custom_call.1} parent=1 // pred_region
      %47 = dma.done [#allocation4], 256
    $region17: #{tpu_custom_call.1} parent=1 // pred_fallthru
      _
    %48 = vsyncpa [#allocation3], 1
    %49 = vsyncpa [#allocation4], 1

</llo_original>
